<compile_context>
chip_gen: v7x
topology: tpu7x:2x2x1
jax: 0.10.0
libtpu: 0.0.40
codegen_flags: <defaults>
</compile_context>

<pallas_src>
import jax
import jax.numpy as jnp
from jax.experimental import pallas as pl
from jax.experimental.pallas import tpu as pltpu

PRELU_ALPHA = 0.25   # nn.PReLU() default init
# TODO(synk): PReLU slope kept at the fresh-init constant 0.25 (per-module
# learned alphas would just be extra (1,)-params threaded into the kernels).
EPS = 1e-5

# ------------------------- model configuration ----------------------------
L1, L2, L3 = 20, 80, 160          # encoder kernel sizes (L2/L3 hard-coded in module)
STRIDE = L1 // 2                  # 10
N_FILT = 256                      # N (aux_enc3 hard-codes 3*256 / spk_embed_dim=256)
B_BOT = 64                        # B  (bottleneck channels)
H_CONV = 128                      # H  (conv channels inside TCN blocks)
P_KER = 3                         # P  (depthwise kernel size)
X_BLOCKS = 2                      # X  (blocks per stack)
NUM_SPK = 10                      # speakers

VMEM_LIMIT = 48 * 1024 * 1024     # scoped-VMEM ceiling (fits v7x's 64 MiB phys)


# ------------------------- small helpers -----------------------------------
def _round_up(v, m):
    return ((v + m - 1) // m) * m


def _cp(**kw):
    cls = getattr(pltpu, "CompilerParams", None)
    if cls is None:                       # older jax fallback
        cls = getattr(pltpu, "TPUCompilerParams")
    return cls(**kw)


def mosaic_params(*sem):
    return _cp(dimension_semantics=tuple(sem), vmem_limit_bytes=VMEM_LIMIT)


def pick_t_tile(T):
    """Largest lane-friendly tile (<= 2048) that evenly divides T."""
    if T <= 2048:
        return T
    for cand in (2048, 1024, 512, 384, 256, 128):
        if T % cand == 0:
            return cand
    return T


# ===========================================================================
#  Pallas kernels
# ===========================================================================
def pointwise_conv(x, w, b=None, act=None, mult=None, out_dtype=jnp.bfloat16):
    """1x1 Conv1d (per-sample channel matmul), T-tiled, bf16 MXU operands.

    x: (N, Cin, T), w: (Cout, Cin), b: (Cout,) or None.
    Optionally fuses bias, ReLU and an element-wise multiplier (mask * w_i).
    """
    Bn, Cin, T = x.shape
    Cout = w.shape[0]
    tT = pick_t_tile(T)
    nT = T // tT
    has_bias = b is not None
    has_mult = mult is not None

    inputs = [x, w.astype(jnp.bfloat16)]
    in_specs = [pl.BlockSpec((1, Cin, tT), lambda n, t: (n, 0, t)),
                pl.BlockSpec((Cout, Cin), lambda n, t: (0, 0))]
    if has_bias:
        inputs.append(b.reshape(Cout, 1).astype(jnp.float32))
        in_specs.append(pl.BlockSpec((Cout, 1), lambda n, t: (0, 0)))
    if has_mult:
        inputs.append(mult)
        in_specs.append(pl.BlockSpec((1, Cout, tT), lambda n, t: (n, 0, t)))

    def kernel(*refs):
        x_ref, w_ref = refs[0], refs[1]
        i = 2
        b_ref = refs[i] if has_bias else None
        i += int(has_bias)
        m_ref = refs[i] if has_mult else None
        o_ref = refs[-1]

        y = jnp.dot(w_ref[...], x_ref[0].astype(jnp.bfloat16),
                    preferred_element_type=jnp.float32)
        if has_bias:
            y = y + b_ref[...]
        if act == "relu":
            y = jnp.maximum(y, 0.0)
        if has_mult:
            y = y * m_ref[0].astype(jnp.float32)
        o_ref[...] = y[None].astype(o_ref.dtype)

    return pl.pallas_call(
        kernel,
        out_shape=jax.ShapeDtypeStruct((Bn, Cout, T), out_dtype),
        grid=(Bn, nT),
        in_specs=in_specs,
        out_specs=pl.BlockSpec((1, Cout, tT), lambda n, t: (n, 0, t)),
        compiler_params=mosaic_params("parallel", "parallel"),
    )(*inputs)


def channelwise_layer_norm(x, weight, bias, out_dtype=jnp.bfloat16):
    """cLN (= LayerNorm over the channel axis, per time step), T-tiled."""
    Bn, C, T = x.shape
    tT = pick_t_tile(T)
    nT = T // tT

    def kernel(x_ref, w_ref, b_ref, o_ref):
        xv = x_ref[0].astype(jnp.float32)                 # (C, tT)
        mean = jnp.mean(xv, axis=0, keepdims=True)
        var = jnp.mean((xv - mean) ** 2, axis=0, keepdims=True)
        y = (xv - mean) * jax.lax.rsqrt(var + EPS) * w_ref[...] + b_ref[...]
        o_ref[...] = y[None].astype(o_ref.dtype)

    return pl.pallas_call(
        kernel,
        out_shape=jax.ShapeDtypeStruct((Bn, C, T), out_dtype),
        grid=(Bn, nT),
        in_specs=[pl.BlockSpec((1, C, tT), lambda n, t: (n, 0, t)),
                  pl.BlockSpec((C, 1), lambda n, t: (0, 0)),
                  pl.BlockSpec((C, 1), lambda n, t: (0, 0))],
        out_specs=pl.BlockSpec((1, C, tT), lambda n, t: (n, 0, t)),
        compiler_params=mosaic_params("parallel", "parallel"),
    )(x, weight.reshape(C, 1).astype(jnp.float32),
      bias.reshape(C, 1).astype(jnp.float32))


def fused_tcn_block(y, p, t_true, aux_emb=None):
    """One Conv1DBlock / Conv1DBlock_v2 fully fused per sample.

    y: (N, B_BOT, Tp) bf16, Tp a multiple of 128 with >= dilation zero slack.
    aux_emb: (N, 1, 256) f32 (v2 block); the [x ; aux.repeat(T)] concat of the
    reference is realized by splitting conv1x1's weight into w1x / w1a.
    Returns (N, B_BOT, Tp) bf16 with the padded lane region zeroed.
    """
    Bn, Cb, Tp = y.shape
    H = p["w1x"].shape[0]
    d = int(p["dilation"])
    has_aux = aux_emb is not None
    inv_cnt = 1.0 / float(H * t_true)

    inputs = [y, p["w1x"].astype(jnp.bfloat16)]
    in_specs = [pl.BlockSpec((1, Cb, Tp), lambda n: (n, 0, 0)),
                pl.BlockSpec(p["w1x"].shape, lambda n: (0, 0))]
    if has_aux:
        A = aux_emb.shape[-1]
        inputs += [p["w1a"], aux_emb]
        in_specs += [pl.BlockSpec(p["w1a"].shape, lambda n: (0, 0)),
                     pl.BlockSpec((1, 1, A), lambda n: (n, 0, 0))]
    inputs += [p["b1"].reshape(H, 1), p["g1"].reshape(H, 1), p["be1"].reshape(H, 1),
               p["wd"], p["bd"].reshape(H, 1),
               p["g2"].reshape(H, 1), p["be2"].reshape(H, 1),
               p["ws"].astype(jnp.bfloat16), p["bs"].reshape(Cb, 1)]
    in_specs += [pl.BlockSpec((H, 1), lambda n: (0, 0)),
                 pl.BlockSpec((H, 1), lambda n: (0, 0)),
                 pl.BlockSpec((H, 1), lambda n: (0, 0)),
                 pl.BlockSpec((H, P_KER), lambda n: (0, 0)),
                 pl.BlockSpec((H, 1), lambda n: (0, 0)),
                 pl.BlockSpec((H, 1), lambda n: (0, 0)),
                 pl.BlockSpec((H, 1), lambda n: (0, 0)),
                 pl.BlockSpec((Cb, H), lambda n: (0, 0)),
                 pl.BlockSpec((Cb, 1), lambda n: (0, 0))]

    def kernel(*refs):
        o_ref = refs[-1]
        y_ref, w1x_ref = refs[0], refs[1]
        i = 2
        if has_aux:
            w1a_ref, aux_ref = refs[2], refs[3]
            i = 4
        (b1_ref, g1_ref, be1_ref, wd_ref, bd_ref,
         g2_ref, be2_ref, ws_ref, bs_ref) = refs[i:i + 9]

        lanes = jax.lax.broadcasted_iota(jnp.int32, (1, Tp), 1)
        mask = (lanes < t_true).astype(jnp.float32)

        def prelu(v):
            return jnp.where(v >= 0.0, v, PRELU_ALPHA * v)

        def gln(v, g, b):
            # masked global layer norm over (C, t_true); zeroes the padded
            # lanes so the depthwise conv sees correct zero padding.
            lane_sum = jnp.sum(v * mask, axis=0, keepdims=True)     # (1, Tp)
            mean = jnp.sum(lane_sum) * inv_cnt
            dlt = v - mean
            lane_sq = jnp.sum(dlt * dlt * mask, axis=0, keepdims=True)
            var = jnp.sum(lane_sq) * inv_cnt
            return (g * dlt * jax.lax.rsqrt(var + EPS) + b) * mask

        x_in = y_ref[0]                                             # (Cb, Tp) bf16
        h = jnp.dot(w1x_ref[...], x_in, preferred_element_type=jnp.float32)
        if has_aux:
            aux_row = aux_ref[0]                                    # (1, A) f32
            h = h + jnp.sum(w1a_ref[...] * aux_row, axis=1, keepdims=True)
        h = h + b1_ref[...]
        h = gln(prelu(h), g1_ref[...], be1_ref[...])

        # Depthwise dilated conv (kernel 3, 'same') via lane rotations (XLU).
        # Padded lanes are zero, so the cyclic wrap reproduces zero-padding.
        acc = wd_ref[:, 1:2] * h
        acc = acc + wd_ref[:, 0:1] * pltpu.roll(h, shift=d, axis=1)
        acc = acc + wd_ref[:, 2:3] * pltpu.roll(h, shift=Tp - d, axis=1)
        acc = acc + bd_ref[...]
        acc = gln(prelu(acc), g2_ref[...], be2_ref[...])

        out = jnp.dot(ws_ref[...], acc.astype(jnp.bfloat16),
                      preferred_element_type=jnp.float32)
        out = (out + bs_ref[...] + x_in.astype(jnp.float32)) * mask
        o_ref[...] = out[None].astype(o_ref.dtype)

    return pl.pallas_call(
        kernel,
        out_shape=jax.ShapeDtypeStruct((Bn, Cb, Tp), jnp.bfloat16),
        grid=(Bn,),
        in_specs=in_specs,
        out_specs=pl.BlockSpec((1, Cb, Tp), lambda n: (n, 0, 0)),
        compiler_params=mosaic_params("parallel"),
    )(*inputs)


def bn_stats(x):
    """Per-channel (sum, sum-of-squares) over (batch, T), accumulated across
    the batch grid (P3 accumulator pattern).  Returns (2, C, 1) f32."""
    Bn, C, T = x.shape

    def kernel(x_ref, o_ref):
        xv = x_ref[0].astype(jnp.float32)                 # (C, T)
        s = jnp.sum(xv, axis=1, keepdims=True)
        q = jnp.sum(xv * xv, axis=1, keepdims=True)

        @pl.when(pl.program_id(0) == 0)
        def _():
            o_ref[0, :, :] = s
            o_ref[1, :, :] = q

        @pl.when(pl.program_id(0) > 0)
        def _():
            o_ref[0, :, :] = o_ref[0, :, :] + s
            o_ref[1, :, :] = o_ref[1, :, :] + q

    return pl.pallas_call(
        kernel,
        out_shape=jax.ShapeDtypeStruct((2, C, 1), jnp.float32),
        grid=(Bn,),
        in_specs=[pl.BlockSpec((1, C, T), lambda n: (n, 0, 0))],
        out_specs=pl.BlockSpec((2, C, 1), lambda n: (0, 0, 0)),
        compiler_params=mosaic_params("arbitrary"),
    )(x)


def bn_apply_prelu(x, stats, gamma, beta, count, residual=None,
                   out_dtype=jnp.bfloat16):
    """Normalize with batch stats, fused residual add + PReLU, gridded over batch."""
    Bn, C, T = x.shape
    has_res = residual is not None
    inv_cnt = 1.0 / float(count)

    inputs = [x, stats,
              gamma.reshape(C, 1).astype(jnp.float32),
              beta.reshape(C, 1).astype(jnp.float32)]
    in_specs = [pl.BlockSpec((1, C, T), lambda n: (n, 0, 0)),
                pl.BlockSpec((2, C, 1), lambda n: (0, 0, 0)),
                pl.BlockSpec((C, 1), lambda n: (0, 0)),
                pl.BlockSpec((C, 1), lambda n: (0, 0))]
    if has_res:
        inputs.append(residual)
        in_specs.append(pl.BlockSpec((1, C, T), lambda n: (n, 0, 0)))

    def kernel(*refs):
        x_ref, s_ref, g_ref, b_ref = refs[0], refs[1], refs[2], refs[3]
        r_ref = refs[4] if has_res else None
        o_ref = refs[-1]
        xv = x_ref[0].astype(jnp.float32)
        mean = s_ref[0, :, :] * inv_cnt                   # (C, 1)
        var = s_ref[1, :, :] * inv_cnt - mean * mean
        y = (xv - mean) * jax.lax.rsqrt(var + EPS) * g_ref[...] + b_ref[...]
        if has_res:
            y = y + r_ref[0].astype(jnp.float32)
        y = jnp.where(y >= 0.0, y, PRELU_ALPHA * y)
        o_ref[...] = y[None].astype(o_ref.dtype)

    return pl.pallas_call(
        kernel,
        out_shape=jax.ShapeDtypeStruct((Bn, C, T), out_dtype),
        grid=(Bn,),
        in_specs=in_specs,
        out_specs=pl.BlockSpec((1, C, T), lambda n: (n, 0, 0)),
        compiler_params=mosaic_params("parallel"),
    )(*inputs)


def batch_norm_prelu(x, gamma, beta, residual=None):
    Bn, _, T = x.shape
    stats = bn_stats(x)
    return bn_apply_prelu(x, stats, gamma, beta, Bn * T, residual=residual)


# ===========================================================================
#  Plain-JAX glue (data movement only)
# ===========================================================================
def frame_signal(x, kernel, stride):
    """im2col for the strided encoders.  x: (N, L) -> frames (N, kernel, T)."""
    # TODO(synk): framing kept as plain-JAX im2col; in-kernel strided framing
    # (pl.ds with stride on the waveform held in VMEM) not implemented.
    T = (x.shape[-1] - kernel) // stride + 1
    idx = jnp.arange(T)[:, None] * stride + jnp.arange(kernel)[None, :]
    frames = x[:, idx]                                    # (N, T, kernel)
    return jnp.transpose(frames, (0, 2, 1))               # (N, kernel, T)


def encode(x, w, b, kernel, stride, t_pad=None):
    """Conv1D(1, N, kernel, stride) + ReLU (matmul in Pallas, bf16 operands)."""
    frames = frame_signal(x, kernel, stride).astype(jnp.bfloat16)
    if t_pad is not None and t_pad > frames.shape[-1]:
        frames = jnp.pad(frames, ((0, 0), (0, 0), (0, t_pad - frames.shape[-1])))
    return pointwise_conv(frames, w, b, act="relu")


def max_pool3(x):
    # TODO(synk): MaxPool1d(3) kept as plain-JAX reshape+max (pure data shuffle).
    Bn, C, T = x.shape
    T3 = T // 3
    return jnp.max(x[:, :, :T3 * 3].reshape(Bn, C, T3, 3), axis=-1)


def decode(s, wdec, bdec, kernel, stride, orig_len, xlen1, t_true):
    """ConvTranspose1d(N, 1, kernel, stride): matmul in Pallas + shift-and-sum
    overlap-add (no scatter)."""
    Bn = s.shape[0]
    L = wdec.shape[1]
    frames_cl = pointwise_conv(s, jnp.transpose(wdec), out_dtype=jnp.float32)
    frames = jnp.transpose(frames_cl, (0, 2, 1))[:, :t_true, :]   # (Bn, T, L)
    m = L // stride                                               # 2 / 8 / 16
    chunks = frames.reshape(Bn, t_true, m, stride)
    out_blocks = t_true + m - 1
    out = jnp.zeros((Bn, out_blocks, stride), jnp.float32)
    for j in range(m):                      # structured overlap-add: m padded adds
        out = out + jnp.pad(chunks[:, :, j, :], ((0, 0), (j, m - 1 - j), (0, 0)))
    out = out.reshape(Bn, out_blocks * stride) + bdec[0]
    out_len = out_blocks * stride           # == (T-1)*stride + L
    if out_len < orig_len:                  # F.pad(x, (0, orig_len - out_len))
        out = jnp.pad(out, ((0, 0), (0, orig_len - out_len)))
    else:
        out = out[:, :orig_len]
    return out[:, :xlen1]


def res_block(x, p):
    """ResBlock of the speaker (aux) encoder."""
    h = pointwise_conv(x, p["w1"])                               # conv1 (no bias)
    h = batch_norm_prelu(h, p["g1"], p["be1"])                   # bn1 + prelu1
    h = pointwise_conv(h, p["w2"])                               # conv2 (no bias)
    res = pointwise_conv(x, p["wd"]) if "wd" in p else x         # downsample
    h = batch_norm_prelu(h, p["g2"], p["be2"], residual=res)     # bn2 + add + prelu2
    return max_pool3(h)


# ===========================================================================
#  Parameters (deterministic synthetic init)
# ===========================================================================
def make_params():
    key_box = [jax.random.PRNGKey(0)]

    def rand(shape, scale=0.1):
        key_box[0], sub = jax.random.split(key_box[0])
        return jax.random.normal(sub, shape, jnp.float32) * scale

    def conv_block_params(dilation, with_aux):
        d = dict(
            w1x=rand((H_CONV, B_BOT)), b1=rand((H_CONV,)),
            g1=jnp.ones((H_CONV,)), be1=jnp.zeros((H_CONV,)),
            wd=rand((H_CONV, P_KER)), bd=rand((H_CONV,)),
            g2=jnp.ones((H_CONV,)), be2=jnp.zeros((H_CONV,)),
            ws=rand((B_BOT, H_CONV)), bs=rand((B_BOT,)),
            dilation=dilation)
        if with_aux:
            d["w1a"] = rand((H_CONV, 256))
        return d

    def resblock_params(in_d, out_d):
        d = dict(w1=rand((out_d, in_d)),
                 g1=jnp.ones((out_d,)), be1=jnp.zeros((out_d,)),
                 w2=rand((out_d, out_d)),
                 g2=jnp.ones((out_d,)), be2=jnp.zeros((out_d,)))
        if in_d != out_d:
            d["wd"] = rand((out_d, in_d))
        return d

    p = {}
    p["enc_short"] = (rand((N_FILT, L1)), rand((N_FILT,)))
    p["enc_mid"] = (rand((N_FILT, L2)), rand((N_FILT,)))
    p["enc_long"] = (rand((N_FILT, L3)), rand((N_FILT,)))
    p["ln"] = (jnp.ones((3 * N_FILT,)), jnp.zeros((3 * N_FILT,)))
    p["proj"] = (rand((B_BOT, 3 * N_FILT)), rand((B_BOT,)))

    p["stacks"] = []
    for _ in range(4):                                    # 4 repeats (hard-coded)
        first = conv_block_params(1, True)                # Conv1DBlock_v2 (dil=1)
        others = [conv_block_params(2 ** b, False) for b in range(1, X_BLOCKS)]
        p["stacks"].append((first, others))

    p["mask1"] = (rand((N_FILT, B_BOT)), rand((N_FILT,)))
    p["mask2"] = (rand((N_FILT, B_BOT)), rand((N_FILT,)))
    p["mask3"] = (rand((N_FILT, B_BOT)), rand((N_FILT,)))
    p["dec1"] = (rand((N_FILT, L1)), rand((1,)))
    p["dec2"] = (rand((N_FILT, L2)), rand((1,)))
    p["dec3"] = (rand((N_FILT, L3)), rand((1,)))

    # aux_enc3
    p["aux_ln"] = (jnp.ones((3 * 256,)), jnp.zeros((3 * 256,)))
    p["aux_conv_in"] = (rand((256, 3 * 256)), rand((256,)))
    p["res1"] = resblock_params(256, 256)
    p["res2"] = resblock_params(256, 512)
    p["res3"] = resblock_params(512, 512)
    p["aux_conv_out"] = (rand((256, 512)), rand((256,)))
    p["pred"] = (rand((NUM_SPK, 256)), rand((NUM_SPK,)))
    return p


# ===========================================================================
#  Full SpEx_plus forward
# ===========================================================================
def spex_plus_forward(params, x, aux, aux_len):
    orig_len = x.shape[1]
    xlen1 = x.shape[-1]
    w_s, b_s = params["enc_short"]
    w_m, b_m = params["enc_mid"]
    w_l, b_l = params["enc_long"]

    # ---- speech encoders (T padded once to a lane multiple; gLN masks it) ----
    T = (xlen1 - L1) // STRIDE + 1
    max_pad = (2 ** (X_BLOCKS - 1)) * (P_KER - 1) // 2      # max dconv padding
    Tp = _round_up(T + max_pad, 128)
    xlen2 = (T - 1) * STRIDE + L2
    xlen3 = (T - 1) * STRIDE + L3
    w1 = encode(x, w_s, b_s, L1, STRIDE, t_pad=Tp)
    w2 = encode(jnp.pad(x, ((0, 0), (0, xlen2 - xlen1))), w_m, b_m, L2, STRIDE, t_pad=Tp)
    w3 = encode(jnp.pad(x, ((0, 0), (0, xlen3 - xlen1))), w_l, b_l, L3, STRIDE, t_pad=Tp)
    w_cat = jnp.concatenate([w1, w2, w3], axis=1)           # (N, 768, Tp) bf16
    y = channelwise_layer_norm(w_cat, *params["ln"])
    y = pointwise_conv(y, *params["proj"])                  # (N, 64, Tp) bf16

    # ---- speaker (aux) encoder (natural T: tiny path, no padding needed) ----
    aux_len1 = aux.shape[-1]
    aux_T_frames = (aux_len1 - L1) // STRIDE + 1
    aux_len2 = (aux_T_frames - 1) * STRIDE + L2
    aux_len3 = (aux_T_frames - 1) * STRIDE + L3
    aux_w1 = encode(aux, w_s, b_s, L1, STRIDE)
    aux_w2 = encode(jnp.pad(aux, ((0, 0), (0, aux_len2 - aux_len1))), w_m, b_m, L2, STRIDE)
    aux_w3 = encode(jnp.pad(aux, ((0, 0), (0, aux_len3 - aux_len1))), w_l, b_l, L3, STRIDE)
    a = jnp.concatenate([aux_w1, aux_w2, aux_w3], axis=1)
    a = channelwise_layer_norm(a, *params["aux_ln"])
    a = pointwise_conv(a, *params["aux_conv_in"])
    a = res_block(a, params["res1"])
    a = res_block(a, params["res2"])
    a = res_block(a, params["res3"])
    a = pointwise_conv(a, *params["aux_conv_out"], out_dtype=jnp.float32)
    aux_T = (aux_len - L1) // STRIDE + 1
    aux_T = aux_T // 3 // 3 // 3
    aux_emb = jnp.sum(a, axis=-1) / aux_T[:, None].astype(jnp.float32)   # (N, 256)
    aux_emb_k = aux_emb[:, None, :].astype(jnp.float32)                  # (N, 1, 256)

    # ---- TCN stacks (4x: Conv1DBlock_v2 + (X-1) Conv1DBlocks), fused ----
    for first, others in params["stacks"]:
        y = fused_tcn_block(y, first, T, aux_emb=aux_emb_k)
        for bp in others:
            y = fused_tcn_block(y, bp, T)

    # ---- masks (non_linear = relu): single stacked matmul fused with s_i = w_i * m_i
    mask_w = jnp.concatenate([params["mask1"][0], params["mask2"][0],
                              params["mask3"][0]], axis=0)   # (768, 64)
    mask_b = jnp.concatenate([params["mask1"][1], params["mask2"][1],
                              params["mask3"][1]], axis=0)   # (768,)
    s_all = pointwise_conv(y, mask_w, mask_b, act="relu", mult=w_cat)
    s1 = s_all[:, :N_FILT]
    s2 = s_all[:, N_FILT:2 * N_FILT]
    s3 = s_all[:, 2 * N_FILT:]

    # ---- decoders ----
    d1 = decode(s1, params["dec1"][0], params["dec1"][1], L1, STRIDE, orig_len, xlen1, T)
    d2 = decode(s2, params["dec2"][0], params["dec2"][1], L2, STRIDE, orig_len, xlen1, T)
    d3 = decode(s3, params["dec3"][0], params["dec3"][1], L3, STRIDE, orig_len, xlen1, T)

    # ---- speaker classifier ----
    logits = pointwise_conv(aux_emb[:, :, None], *params["pred"],
                            out_dtype=jnp.float32)[:, :, 0]
    return d1, d2, d3, logits


# ===========================================================================
if __name__ == "__main__":
    params = make_params()

    key = jax.random.PRNGKey(0)
    kx, ka = jax.random.split(key)
    x = jax.random.normal(kx, (2, 320), jnp.float32)      # mixture waveform
    aux = jax.random.normal(ka, (2, 640), jnp.float32)    # reference waveform
    aux_len = jnp.array([640, 600], dtype=jnp.int32)      # true aux lengths

    d1, d2, d3, logits = spex_plus_forward(params, x, aux, aux_len)
    jax.block_until_ready((d1, d2, d3, logits))

    assert d1.shape == (2, 320) and d2.shape == (2, 320) and d3.shape == (2, 320)
    assert logits.shape == (2, NUM_SPK)
    assert all(bool(jnp.all(jnp.isfinite(t))) for t in (d1, d2, d3, logits))
    print("KERNEL_OK")
</pallas_src>

<mosaic_0001>
module attributes {stable_mosaic.version = 11 : i64} {
  func.func @kernel(%arg0: i32, %arg1: i32, %arg2: memref<1x20x128xbf16, #tpu.memory_space<vmem>>, %arg3: memref<256x20xbf16, #tpu.memory_space<vmem>>, %arg4: memref<256x1xf32, #tpu.memory_space<vmem>>, %arg5: memref<1x256x128xbf16, #tpu.memory_space<vmem>>) attributes {dimension_semantics = [#tpu.dimension_semantics<parallel>, #tpu.dimension_semantics<parallel>], iteration_bounds = array<i64: 2, 1>, scalar_prefetch = 0 : i64, scratch_operands = 0 : i64, tpu.core_type = #tpu.core_type<tc>, window_params = [{transform_indices = @transform_0, window_bounds = array<i64: 1, 20, 128>}, {pipeline_mode = #tpu.pipeline_mode<synchronous>, transform_indices = @transform_1, window_bounds = array<i64: 256, 20>}, {pipeline_mode = #tpu.pipeline_mode<synchronous>, transform_indices = @transform_2, window_bounds = array<i64: 256, 1>}, {transform_indices = @transform_3, window_bounds = array<i64: 1, 256, 128>}]} {
    %c0 = arith.constant 0 : index
    %c0_0 = arith.constant 0 : index
    %0 = vector.load %arg3[%c0, %c0_0] : memref<256x20xbf16, #tpu.memory_space<vmem>>, vector<256x20xbf16>
    %c0_1 = arith.constant 0 : index
    %c0_2 = arith.constant 0 : index
    %c0_3 = arith.constant 0 : index
    %1 = vector.load %arg2[%c0_1, %c0_2, %c0_3] : memref<1x20x128xbf16, #tpu.memory_space<vmem>>, vector<1x20x128xbf16>
    %2 = vector.shape_cast %1 : vector<1x20x128xbf16> to vector<20x128xbf16>
    %cst = arith.constant dense<0.000000e+00> : vector<256x128xf32>
    %3 = tpu.matmul %0, %2, %cst {dimension_numbers = #tpu.dot_dimension_numbers<[1], [0], [0], [1], [0, 0, 1, 1], [], []>} : vector<256x20xbf16>, vector<20x128xbf16>, vector<256x128xf32> -> vector<256x128xf32>
    %c0_4 = arith.constant 0 : index
    %c0_5 = arith.constant 0 : index
    %4 = vector.load %arg4[%c0_4, %c0_5] : memref<256x1xf32, #tpu.memory_space<vmem>>, vector<256x1xf32>
    %5 = vector.broadcast %4 : vector<256x1xf32> to vector<256x128xf32>
    %6 = arith.addf %3, %5 : vector<256x128xf32>
    %cst_6 = arith.constant 0.000000e+00 : f32
    %7 = vector.broadcast %cst_6 : f32 to vector<256x128xf32>
    %8 = arith.maximumf %6, %7 : vector<256x128xf32>
    %9 = vector.shape_cast %8 : vector<256x128xf32> to vector<1x256x128xf32>
    %10 = arith.truncf %9 : vector<1x256x128xf32> to vector<1x256x128xbf16>
    %c0_7 = arith.constant 0 : index
    %c0_8 = arith.constant 0 : index
    %c0_9 = arith.constant 0 : index
    %11 = vector.load %arg5[%c0_7, %c0_8, %c0_9] : memref<1x256x128xbf16, #tpu.memory_space<vmem>>, vector<1x256x128xbf16>
    tpu.vector_store %arg5[%c0_7, %c0_8, %c0_9], %10 {strides = array<i32>} : memref<1x256x128xbf16, #tpu.memory_space<vmem>>, vector<1x256x128xbf16>,
    return
  }
  func.func @transform_0(%arg0: i32, %arg1: i32) -> (i32, i32, i32) {
    %c0_i32 = arith.constant 0 : i32
    %c0_i32_0 = arith.constant 0 : i32
    return %arg0, %c0_i32, %arg1 : i32, i32, i32
  }
  func.func @transform_1(%arg0: i32, %arg1: i32) -> (i32, i32) {
    %c0_i32 = arith.constant 0 : i32
    %c0_i32_0 = arith.constant 0 : i32
    %c0_i32_1 = arith.constant 0 : i32
    return %c0_i32, %c0_i32_0 : i32, i32
  }
  func.func @transform_2(%arg0: i32, %arg1: i32) -> (i32, i32) {
    %c0_i32 = arith.constant 0 : i32
    %c0_i32_0 = arith.constant 0 : i32
    %c0_i32_1 = arith.constant 0 : i32
    return %c0_i32, %c0_i32_0 : i32, i32
  }
  func.func @transform_3(%arg0: i32, %arg1: i32) -> (i32, i32, i32) {
    %c0_i32 = arith.constant 0 : i32
    %c0_i32_0 = arith.constant 0 : i32
    return %arg0, %c0_i32, %arg1 : i32, i32, i32
  }
}

</mosaic_0001>

<llo_original>
// kernel: tpu_custom_call.1
$region0: #{tpu_custom_call.1}
  #allocation0 [shape = 'u32[]', space=smem, size = 0x4, offset = 0x4, fixed_abs, tag = 'smem constant byte address 0x4 - core index']
  #allocation1 [shape = 'u32[144,128]{1,0:T(1,128)}', space=vmem, size = 0x12000, scoped, tag = 'internal scratch']
  %s0 = inlined_call_operand.vmem [shape: bf16[2,20,128], index: 0, kind: input, shape index: {}]
  %s1 = inlined_call_operand.vmem [shape: bf16[256,20], index: 1, kind: input, shape index: {}]
  %s2 = inlined_call_operand.vmem [shape: f32[256,1], index: 2, kind: input, shape index: {}]
  %s3 = inlined_call_operand.hbm [shape: bf16[2,256,128], index: 3, kind: output, shape index: {}]
  %s4 = sld [smem:[#allocation0]]
  $region45: #{tpu_custom_call.1} parent=0
    _
  %s6 = ssub.s32 1, %s4
  %s7 = scalar_select 0, %s6, %s4
  $region1: #{tpu_custom_call.1} parent=0
    #allocation2 [shape = 'u8[131072]{0}', space=vmem, size = 0x20000, scoped, tag = 'output window, operand 0']
    #allocation3 [shape = 's32[2]{0}', space=sflag, size = 0x8, scoped, tag = 'scoped memory for tpu_custom_call.1']
    %8 = vsyncpa [#allocation3], 0
    %s9 = scalar_lea.sflag [#allocation3], 1
    %10 = vsyncpa %s9, 0
    loop: start=0, step=1, limit=4
    $region2: #{tpu_custom_call.1} parent=1 // loop_pre_header
      _
    $region3: #{tpu_custom_call.1} parent=1 // loop_header
      %s12 = sphi 0, %s16
      %p13 = scmp.ge.s32.totalorder %s12, 4
      %s19 = sphi 0, %s31
      %s20 = sphi 0, %s27
      %s21 = sphi 0, %s19
      %s22 = sphi 0, %s20
      %s23 = sphi 0, %s21
      %s24 = sphi 0, %s22
      %s36 = sphi 0, %s38
      %s39 = sphi 0, %s36
      %s40 = sphi 0, %s39
      %s56 = sphi 0, %s40
      %s60 = sphi 0, %s60
      %s62 = sphi 0, %s60
      %s63 = sphi 0, %s62
      %s77 = sphi 0, %s63
      %s81 = sphi 0, %s81
      %s83 = sphi 0, %s81
      %s84 = sphi 0, %s83
      %s98 = sphi 0, %s84
      %s106 = sphi 0, %s108
      %s109 = sphi 0, %s106
      %s110 = sphi 0, %s109
      %s126 = sphi 0, %s110
    $region4: #{tpu_custom_call.1} parent=1 // loop_header_branch
      %15 = sbr.rel (%p13) target = $region8
    $region5: #{tpu_custom_call.1} parent=1 // loop_body
      %s17 = ssub.s32 %s12, 1
      %s18 = ssub.s32 %s12, 2
      %s25 = sadd.s32 1, %s20
      %p26 = scmp.ge.s32.totalorder %s25, 1
      %s27 = scalar_select %p26, 0, %s25
      %s28 = sadd.s32 1, %s19
      %s29 = scalar_select %p26, %s28, %s19
      %p30 = scmp.ge.s32.totalorder %s29, 2
      %s31 = scalar_select %p30, 0, %s29
      %s32 = ssub.s32 %s19, %s31
      %s33 = ssub.s32 %s20, %s27
      %s34 = sor.u32 %s32, %s33
      %p35 = scmp.eq.s32.totalorder %s34, 0
      %s37 = sadd.s32 %s36, 1
      %s38 = scalar_select %p35, %s36, %s37
      %p41 = pneg %p35
      %p42 = scmp.eq.s32.totalorder %s12, 1
      %p43 = por %p41, %p42
      %p44 = scmp.ne.s32.totalorder %s36, %s39
      %p45 = scmp.eq.s32.totalorder %s12, 0
      %p46 = por %p44, %p45
      %p47 = scmp.ne.s32.totalorder %s36, %s39
      %p48 = scmp.eq.s32.totalorder %s17, 1
      %p49 = por %p47, %p48
      %p50 = scmp.ne.s32.totalorder %s39, %s40
      %p51 = scmp.eq.s32.totalorder %s17, 0
      %p52 = por %p50, %p51
      %p53 = scmp.ne.s32.totalorder %s39, %s40
      %p54 = scmp.eq.s32.totalorder %s18, 1
      %p55 = por %p53, %p54
      %p57 = scmp.ne.s32.totalorder %s40, %s56
      %p58 = scmp.eq.s32.totalorder %s18, 0
      %p59 = por %p57, %p58
      %s61 = sadd.s32 %s60, 1
      %p64 = scmp.eq.s32.totalorder %s12, 1
      %p65 = scmp.ne.s32.totalorder %s60, %s62
      %p66 = scmp.eq.s32.totalorder %s12, 0
      %p67 = por %p65, %p66
      %p68 = scmp.ne.s32.totalorder %s60, %s62
      %p69 = scmp.eq.s32.totalorder %s17, 1
      %p70 = por %p68, %p69
      %p71 = scmp.ne.s32.totalorder %s62, %s63
      %p72 = scmp.eq.s32.totalorder %s17, 0
      %p73 = por %p71, %p72
      %p74 = scmp.ne.s32.totalorder %s62, %s63
      %p75 = scmp.eq.s32.totalorder %s18, 1
      %p76 = por %p74, %p75
      %p78 = scmp.ne.s32.totalorder %s63, %s77
      %p79 = scmp.eq.s32.totalorder %s18, 0
      %p80 = por %p78, %p79
      %s82 = sadd.s32 %s81, 1
      %p85 = scmp.eq.s32.totalorder %s12, 1
      %p86 = scmp.ne.s32.totalorder %s81, %s83
      %p87 = scmp.eq.s32.totalorder %s12, 0
      %p88 = por %p86, %p87
      %p89 = scmp.ne.s32.totalorder %s81, %s83
      %p90 = scmp.eq.s32.totalorder %s17, 1
      %p91 = por %p89, %p90
      %p92 = scmp.ne.s32.totalorder %s83, %s84
      %p93 = scmp.eq.s32.totalorder %s17, 0
      %p94 = por %p92, %p93
      %p95 = scmp.ne.s32.totalorder %s83, %s84
      %p96 = scmp.eq.s32.totalorder %s18, 1
      %p97 = por %p95, %p96
      %p99 = scmp.ne.s32.totalorder %s84, %s98
      %p100 = scmp.eq.s32.totalorder %s18, 0
      %p101 = por %p99, %p100
      %s102 = ssub.s32 %s19, %s31
      %s103 = ssub.s32 %s20, %s27
      %s104 = sor.u32 %s102, %s103
      %p105 = scmp.eq.s32.totalorder %s104, 0
      %s107 = sadd.s32 %s106, 1
      %s108 = scalar_select %p105, %s106, %s107
      %p111 = pneg %p105
      %p112 = scmp.eq.s32.totalorder %s12, 1
      %p113 = por %p111, %p112
      %p114 = scmp.ne.s32.totalorder %s106, %s109
      %p115 = scmp.eq.s32.totalorder %s12, 0
      %p116 = por %p114, %p115
      %p117 = scmp.ne.s32.totalorder %s106, %s109
      %p118 = scmp.eq.s32.totalorder %s17, 1
      %p119 = por %p117, %p118
      %p120 = scmp.ne.s32.totalorder %s109, %s110
      %p121 = scmp.eq.s32.totalorder %s17, 0
      %p122 = por %p120, %p121
      %p123 = scmp.ne.s32.totalorder %s109, %s110
      %p124 = scmp.eq.s32.totalorder %s18, 1
      %p125 = por %p123, %p124
      %p127 = scmp.ne.s32.totalorder %s110, %s126
      %p128 = scmp.eq.s32.totalorder %s18, 0
      %p129 = por %p127, %p128
      %p130 = scmp.le.s32.totalorder 1, %s12
      %p131 = scmp.lt.s32.totalorder %s12, 3
      %p132 = pnand %p130, %p131
      %p133 = pneg %p132
      // Predicated region
      $region9: #{tpu_custom_call.1} parent=5 // pred_check
        _
      $region10: #{tpu_custom_call.1} parent=5 // pred_check_branch
        %135 = sbr.rel (%p132) target = $region12
      $region11: #{tpu_custom_call.1} parent=5 // pred_region
        %s136 = ssub.s32 %s12, 1
        // Predicated region
        $region13: #{tpu_custom_call.1} parent=11 // pred_check
          %p137 = pneg %p73
        $region14: #{tpu_custom_call.1} parent=11 // pred_check_branch
          %139 = sbr.rel (%p137) target = $region16
        $region15: #{tpu_custom_call.1} parent=11 // pred_region
          _
        $region16: #{tpu_custom_call.1} parent=11 // pred_fallthru
          _
        // Predicated region
        $region17: #{tpu_custom_call.1} parent=11 // pred_check
          %p140 = pneg %p94
        $region18: #{tpu_custom_call.1} parent=11 // pred_check_branch
          %142 = sbr.rel (%p140) target = $region20
        $region19: #{tpu_custom_call.1} parent=11 // pred_region
          _
        $region20: #{tpu_custom_call.1} parent=11 // pred_fallthru
          _
      $region12: #{tpu_custom_call.1} parent=5 // pred_fallthru
        _
      %p143 = scmp.lt.s32.totalorder %s12, 2
      // Predicated region
      $region21: #{tpu_custom_call.1} parent=5 // pred_check
        %p144 = pneg %p143
      $region22: #{tpu_custom_call.1} parent=5 // pred_check_branch
        %146 = sbr.rel (%p144) target = $region24
      $region23: #{tpu_custom_call.1} parent=5 // pred_region
        // Predicated region
        $region25: #{tpu_custom_call.1} parent=23 // pred_check
          %p147 = pneg %p46
        $region26: #{tpu_custom_call.1} parent=23 // pred_check_branch
          %149 = sbr.rel (%p147) target = $region28
        $region27: #{tpu_custom_call.1} parent=23 // pred_region
          %p150 = scmp.lt.s32.totalorder %s19, 1
          %s151 = scalar_select %p150, %s19, 1
          %p152 = scmp.lt.s32.totalorder %s20, 0
          %s153 = scalar_select %p152, %s20, 0
          %s154 = smul.addr %s151, 3
          %s155 = sadd.s32 %s153, %s154
          %s156 = smul.addr %s155, 4
          %s157 = scalar_lea.vmem %s0, %s156
        $region28: #{tpu_custom_call.1} parent=23 // pred_fallthru
          _
      $region24: #{tpu_custom_call.1} parent=5 // pred_fallthru
        _
      %p158 = scmp.le.s32.totalorder 1, %s12
      %p159 = scmp.lt.s32.totalorder %s12, 3
      %p160 = pnand %p158, %p159
      %p161 = pneg %p160
      // Predicated region
      $region29: #{tpu_custom_call.1} parent=5 // pred_check
        _
      $region30: #{tpu_custom_call.1} parent=5 // pred_check_branch
        %163 = sbr.rel (%p160) target = $region32
      $region31: #{tpu_custom_call.1} parent=5 // pred_region
        %s164 = ssub.s32 %s12, 1
        %p165 = scmp.lt.s32.totalorder %s21, 1
        %s166 = scalar_select %p165, %s21, 1
        %p167 = scmp.lt.s32.totalorder %s22, 0
        %s168 = scalar_select %p167, %s22, 0
        %s169 = smul.addr %s166, 3
        %s170 = sadd.s32 %s168, %s169
        %s171 = smul.addr %s170, 4
        %s172 = scalar_lea.vmem %s0, %s171
        %p173 = pneg %p52
        %p174 = pneg %p49
        %p175 = pneg %p73
        %p176 = pneg %p70
        %p177 = pneg %p94
        %p178 = pneg %p91
        %p179 = pneg %p122
        %p180 = pneg %p119
        %s181 = sand.u32 %s109, 1
        %s182 = scalar_lea.sflag [#allocation3], %s181
        %s183 = sand.u32 %s109, 1
        %s184 = smul.addr %s183, 128
        %s185 = scalar_lea.vmem [#allocation2], %s184
        %p186 = scmp.lt.s32.totalorder %s21, 1
        %s187 = scalar_select %p186, %s21, 1
        %p188 = scmp.lt.s32.totalorder %s22, 0
        %s189 = scalar_select %p188, %s22, 0
        %s190 = smul.addr %s187, 3
        %s191 = sadd.s32 %s189, %s190
        %s192 = smul.addr %s191, 4
        %s193 = scalar_lea.vmem %s0, %s192
        %v195 = vld [vmem:[%s1] sm:$0xf]
        %v196 = vld [vmem:[%s1 + $0x4] sm:$0xf]
        %v197 = vld [vmem:[%s1 + $0x8] sm:$0xf]
        %v198 = vld [vmem:[%s1 + $0xc] sm:$0xf]
        %v199 = vld [vmem:[%s1 + $0x10] sm:$0xf]
        %v200 = vld [vmem:[%s1 + $0x14] sm:$0xf]
        %v201 = vld [vmem:[%s1 + $0x18] sm:$0xf]
        %v202 = vld [vmem:[%s1 + $0x1c] sm:$0xf]
        %v203 = vld [vmem:[%s1 + $0x20] sm:$0xf]
        %v204 = vld [vmem:[%s1 + $0x24] sm:$0xf]
        %v205 = vld [vmem:[%s1 + $0x28] sm:$0xf]
        %v206 = vld [vmem:[%s1 + $0x2c] sm:$0xf]
        %v207 = vld [vmem:[%s1 + $0x30] sm:$0xf]
        %v208 = vld [vmem:[%s1 + $0x34] sm:$0xf]
        %v209 = vld [vmem:[%s1 + $0x38] sm:$0xf]
        %v210 = vld [vmem:[%s1 + $0x3c] sm:$0xf]
        %v211 = vld [vmem:[%s1 + $0x40] sm:$0xf]
        %v212 = vld [vmem:[%s1 + $0x44] sm:$0xf]
        %v213 = vld [vmem:[%s1 + $0x48] sm:$0xf]
        %v214 = vld [vmem:[%s1 + $0x4c] sm:$0xf]
        %v215 = vld [vmem:[%s1 + $0x50] sm:$0xf]
        %v216 = vld [vmem:[%s1 + $0x54] sm:$0xf]
        %v217 = vld [vmem:[%s1 + $0x58] sm:$0xf]
        %v218 = vld [vmem:[%s1 + $0x5c] sm:$0xf]
        %v219 = vld [vmem:[%s1 + $0x60] sm:$0xf]
        %v220 = vld [vmem:[%s1 + $0x64] sm:$0xf]
        %v221 = vld [vmem:[%s1 + $0x68] sm:$0xf]
        %v222 = vld [vmem:[%s1 + $0x6c] sm:$0xf]
        %v223 = vld [vmem:[%s1 + $0x70] sm:$0xf]
        %v224 = vld [vmem:[%s1 + $0x74] sm:$0xf]
        %v225 = vld [vmem:[%s1 + $0x78] sm:$0xf]
        %v226 = vld [vmem:[%s1 + $0x7c] sm:$0xf]
        %v227 = vld [vmem:[%s193] sm:$0xf]
        %v228 = vld [vmem:[%s193 + $0x4] sm:$0xf]
        %v229 = vld [vmem:[%s193 + $0x8] sm:$0x3]
        %v230 = vld [vmem:[%s2] sm:$0xff]
        %v231 = vld [vmem:[%s2 + $0x8] sm:$0xff]
        %v232 = vld [vmem:[%s2 + $0x10] sm:$0xff]
        %v233 = vld [vmem:[%s2 + $0x18] sm:$0xff]
        %v234 = vld [vmem:[%s2 + $0x20] sm:$0xff]
        %v235 = vld [vmem:[%s2 + $0x28] sm:$0xff]
        %v236 = vld [vmem:[%s2 + $0x30] sm:$0xff]
        %v237 = vld [vmem:[%s2 + $0x38] sm:$0xff]
        %v238 = vld [vmem:[%s2 + $0x40] sm:$0xff]
        %v239 = vld [vmem:[%s2 + $0x48] sm:$0xff]
        %v240 = vld [vmem:[%s2 + $0x50] sm:$0xff]
        %v241 = vld [vmem:[%s2 + $0x58] sm:$0xff]
        %v242 = vld [vmem:[%s2 + $0x60] sm:$0xff]
        %v243 = vld [vmem:[%s2 + $0x68] sm:$0xff]
        %v244 = vld [vmem:[%s2 + $0x70] sm:$0xff]
        %v245 = vld [vmem:[%s2 + $0x78] sm:$0xff]
        %v246 = vld [vmem:[%s2 + $0x80] sm:$0xff]
        %v247 = vld [vmem:[%s2 + $0x88] sm:$0xff]
        %v248 = vld [vmem:[%s2 + $0x90] sm:$0xff]
        %v249 = vld [vmem:[%s2 + $0x98] sm:$0xff]
        %v250 = vld [vmem:[%s2 + $0xa0] sm:$0xff]
        %v251 = vld [vmem:[%s2 + $0xa8] sm:$0xff]
        %v252 = vld [vmem:[%s2 + $0xb0] sm:$0xff]
        %v253 = vld [vmem:[%s2 + $0xb8] sm:$0xff]
        %v254 = vld [vmem:[%s2 + $0xc0] sm:$0xff]
        %v255 = vld [vmem:[%s2 + $0xc8] sm:$0xff]
        %v256 = vld [vmem:[%s2 + $0xd0] sm:$0xff]
        %v257 = vld [vmem:[%s2 + $0xd8] sm:$0xff]
        %v258 = vld [vmem:[%s2 + $0xe0] sm:$0xff]
        %v259 = vld [vmem:[%s2 + $0xe8] sm:$0xff]
        %v260 = vld [vmem:[%s2 + $0xf0] sm:$0xff]
        %v261 = vld [vmem:[%s2 + $0xf8] sm:$0xff]
        %263 = vset.pattern.permute.xlu0 0
        %264 = vperm.xlu0 %263, %v230
        %v265 = vpop.permute.xlu0 %264
        %268 = vset.pattern.permute.xlu0 0
        %269 = vperm.xlu0 %268, %v231
        %v270 = vpop.permute.xlu0 %269
        %273 = vset.pattern.permute.xlu0 0
        %274 = vperm.xlu0 %273, %v232
        %v275 = vpop.permute.xlu0 %274
        %278 = vset.pattern.permute.xlu0 0
        %279 = vperm.xlu0 %278, %v233
        %v280 = vpop.permute.xlu0 %279
        %283 = vset.pattern.permute.xlu0 0
        %284 = vperm.xlu0 %283, %v234
        %v285 = vpop.permute.xlu0 %284
        %288 = vset.pattern.permute.xlu0 0
        %289 = vperm.xlu0 %288, %v235
        %v290 = vpop.permute.xlu0 %289
        %293 = vset.pattern.permute.xlu0 0
        %294 = vperm.xlu0 %293, %v236
        %v295 = vpop.permute.xlu0 %294
        %298 = vset.pattern.permute.xlu0 0
        %299 = vperm.xlu0 %298, %v237
        %v300 = vpop.permute.xlu0 %299
        %303 = vset.pattern.permute.xlu0 0
        %304 = vperm.xlu0 %303, %v238
        %v305 = vpop.permute.xlu0 %304
        %308 = vset.pattern.permute.xlu0 0
        %309 = vperm.xlu0 %308, %v239
        %v310 = vpop.permute.xlu0 %309
        %313 = vset.pattern.permute.xlu0 0
        %314 = vperm.xlu0 %313, %v240
        %v315 = vpop.permute.xlu0 %314
        %318 = vset.pattern.permute.xlu0 0
        %319 = vperm.xlu0 %318, %v241
        %v320 = vpop.permute.xlu0 %319
        %323 = vset.pattern.permute.xlu0 0
        %324 = vperm.xlu0 %323, %v242
        %v325 = vpop.permute.xlu0 %324
        %328 = vset.pattern.permute.xlu0 0
        %329 = vperm.xlu0 %328, %v243
        %v330 = vpop.permute.xlu0 %329
        %333 = vset.pattern.permute.xlu0 0
        %334 = vperm.xlu0 %333, %v244
        %v335 = vpop.permute.xlu0 %334
        %338 = vset.pattern.permute.xlu0 0
        %339 = vperm.xlu0 %338, %v245
        %v340 = vpop.permute.xlu0 %339
        %343 = vset.pattern.permute.xlu0 0
        %344 = vperm.xlu0 %343, %v246
        %v345 = vpop.permute.xlu0 %344
        %348 = vset.pattern.permute.xlu0 0
        %349 = vperm.xlu0 %348, %v247
        %v350 = vpop.permute.xlu0 %349
        %353 = vset.pattern.permute.xlu0 0
        %354 = vperm.xlu0 %353, %v248
        %v355 = vpop.permute.xlu0 %354
        %358 = vset.pattern.permute.xlu0 0
        %359 = vperm.xlu0 %358, %v249
        %v360 = vpop.permute.xlu0 %359
        %363 = vset.pattern.permute.xlu0 0
        %364 = vperm.xlu0 %363, %v250
        %v365 = vpop.permute.xlu0 %364
        %368 = vset.pattern.permute.xlu0 0
        %369 = vperm.xlu0 %368, %v251
        %v370 = vpop.permute.xlu0 %369
        %373 = vset.pattern.permute.xlu0 0
        %374 = vperm.xlu0 %373, %v252
        %v375 = vpop.permute.xlu0 %374
        %378 = vset.pattern.permute.xlu0 0
        %379 = vperm.xlu0 %378, %v253
        %v380 = vpop.permute.xlu0 %379
        %383 = vset.pattern.permute.xlu0 0
        %384 = vperm.xlu0 %383, %v254
        %v385 = vpop.permute.xlu0 %384
        %388 = vset.pattern.permute.xlu0 0
        %389 = vperm.xlu0 %388, %v255
        %v390 = vpop.permute.xlu0 %389
        %393 = vset.pattern.permute.xlu0 0
        %394 = vperm.xlu0 %393, %v256
        %v395 = vpop.permute.xlu0 %394
        %398 = vset.pattern.permute.xlu0 0
        %399 = vperm.xlu0 %398, %v257
        %v400 = vpop.permute.xlu0 %399
        %403 = vset.pattern.permute.xlu0 0
        %404 = vperm.xlu0 %403, %v258
        %v405 = vpop.permute.xlu0 %404
        %408 = vset.pattern.permute.xlu0 0
        %409 = vperm.xlu0 %408, %v259
        %v410 = vpop.permute.xlu0 %409
        %413 = vset.pattern.permute.xlu0 0
        %414 = vperm.xlu0 %413, %v260
        %v415 = vpop.permute.xlu0 %414
        %418 = vset.pattern.permute.xlu0 0
        %419 = vperm.xlu0 %418, %v261
        %v420 = vpop.permute.xlu0 %419
        %v454 = vunpack.c.l.b16 %v195
        %v455 = vunpack.c.l.b16 %v196
        %v456 = vunpack.c.l.b16 %v197
        %v457 = vunpack.c.l.b16 %v198
        %v458 = vunpack.c.l.b16 %v199
        %v459 = vunpack.c.l.b16 %v200
        %v460 = vunpack.c.l.b16 %v201
        %v461 = vunpack.c.l.b16 %v202
        %v462 = vunpack.c.l.b16 %v203
        %v463 = vunpack.c.l.b16 %v204
        %v464 = vunpack.c.l.b16 %v205
        %v465 = vunpack.c.l.b16 %v206
        %v466 = vunpack.c.l.b16 %v207
        %v467 = vunpack.c.l.b16 %v208
        %v468 = vunpack.c.l.b16 %v209
        %v469 = vunpack.c.l.b16 %v210
        %v470 = vunpack.c.l.b16 %v211
        %v471 = vunpack.c.l.b16 %v212
        %v472 = vunpack.c.l.b16 %v213
        %v473 = vunpack.c.l.b16 %v214
        %v474 = vunpack.c.l.b16 %v215
        %v475 = vunpack.c.l.b16 %v216
        %v476 = vunpack.c.l.b16 %v217
        %v477 = vunpack.c.l.b16 %v218
        %v478 = vunpack.c.l.b16 %v219
        %v479 = vunpack.c.l.b16 %v220
        %v480 = vunpack.c.l.b16 %v221
        %v481 = vunpack.c.l.b16 %v222
        %v482 = vunpack.c.l.b16 %v223
        %v483 = vunpack.c.l.b16 %v224
        %v484 = vunpack.c.l.b16 %v225
        %v485 = vunpack.c.l.b16 %v226
        %v486 = vpack.c.b16 %v455, %v454
        %v487 = vpack.c.b16 %v457, %v456
        %v488 = vpack.c.b16 %v459, %v458
        %v489 = vpack.c.b16 %v461, %v460
        %v490 = vpack.c.b16 %v463, %v462
        %v491 = vpack.c.b16 %v465, %v464
        %v492 = vpack.c.b16 %v467, %v466
        %v493 = vpack.c.b16 %v469, %v468
        %v494 = vpack.c.b16 %v471, %v470
        %v495 = vpack.c.b16 %v473, %v472
        %v496 = vpack.c.b16 %v475, %v474
        %v497 = vpack.c.b16 %v477, %v476
        %v498 = vpack.c.b16 %v479, %v478
        %v499 = vpack.c.b16 %v481, %v480
        %v500 = vpack.c.b16 %v483, %v482
        %v501 = vpack.c.b16 %v485, %v484
        %v505 = vunpack.c.l.b16 %v227
        %v506 = vunpack.c.l.b16 %v228
        %v507 = vunpack.c.l.b16 %v229
        %v508 = vpack.c.b16 %v506, %v505
        %v509 = vpack.c.b16 %v507, %v507
        %vm511 = vcmask 162816
        %v513 = vsel %vm511, %v486, 0
        %v516 = vsel %vm511, %v487, 0
        %v519 = vsel %vm511, %v488, 0
        %v522 = vsel %vm511, %v489, 0
        %v525 = vsel %vm511, %v490, 0
        %v528 = vsel %vm511, %v491, 0
        %v531 = vsel %vm511, %v492, 0
        %v534 = vsel %vm511, %v493, 0
        %v537 = vsel %vm511, %v494, 0
        %v540 = vsel %vm511, %v495, 0
        %v543 = vsel %vm511, %v496, 0
        %v546 = vsel %vm511, %v497, 0
        %v549 = vsel %vm511, %v498, 0
        %v552 = vsel %vm511, %v499, 0
        %v555 = vsel %vm511, %v500, 0
        %v558 = vsel %vm511, %v501, 0
        %vm560 = vcmask 1041408
        %v562 = vsel %vm560, %v509, 0
        %564 = vmatprep.subr.bf16.mxu0 0
        %565 = vmatpush1.bf16.msra.mxu0 %v508
        %566 = vmatprep.subr.bf16.mxu0 0
        %567 = vmatpush1.bf16.msra.mxu0 %v562
        %568 = vmatprep.subr.bf16.mxu0 0
        %569 = vmatpush1.bf16.msra.mxu0 0
        %570 = vmatprep.subr.bf16.mxu0 0
        %571 = vmatpush1.bf16.msra.mxu0 0
        %572 = vmatprep.subr.bf16.mxu0 0
        %573 = vmatpush1.bf16.msra.mxu0 0
        %574 = vmatprep.subr.bf16.mxu0 0
        %575 = vmatpush1.bf16.msra.mxu0 0
        %576 = vmatprep.subr.bf16.mxu0 0
        %577 = vmatpush1.bf16.msra.mxu0 0
        %578 = vmatprep.subr.bf16.mxu0 0
        %579 = vmatpush1.bf16.msra.mxu0 0
        %580 = vmatprep.subr.bf16.mxu0 0
        %581 = vmatpush1.bf16.msra.mxu0 0
        %582 = vmatprep.subr.bf16.mxu0 0
        %583 = vmatpush1.bf16.msra.mxu0 0
        %584 = vmatprep.subr.bf16.mxu0 0
        %585 = vmatpush1.bf16.msra.mxu0 0
        %586 = vmatprep.subr.bf16.mxu0 0
        %587 = vmatpush1.bf16.msra.mxu0 0
        %588 = vmatprep.subr.bf16.mxu0 0
        %589 = vmatpush1.bf16.msra.mxu0 0
        %590 = vmatprep.subr.bf16.mxu0 0
        %591 = vmatpush1.bf16.msra.mxu0 0
        %592 = vmatprep.subr.bf16.mxu0 0
        %593 = vmatpush1.bf16.msra.mxu0 0
        %594 = vmatprep.subr.bf16.mxu0 0
        %595 = vmatpush1.bf16.msra.mxu0 0
        %596 = vmatprep.mubr.bf16.mxu0 0
        %597 = vmatmul.mubr.bf16.gmra.mrb[0].mxu0 %v513
        %v598 = vpop.f32.mrb[0].mxu0
        %v599 = vadd.f32 %v265, %v598
        %v600 = vpop.f32.mrb[0].mxu0
        %v601 = vpop.f32.mrb[0].mxu0
        %v602 = vadd.f32 %v270, %v601
        %v603 = vpop.f32.mrb[0].mxu0
        %604 = vmatprep.mubr.bf16.mxu0 0
        %605 = vmatmul.mubr.bf16.gmra.mrb[0].mxu0 %v516
        %v606 = vpop.f32.mrb[0].mxu0
        %v607 = vadd.f32 %v275, %v606
        %v608 = vpop.f32.mrb[0].mxu0
        %v609 = vpop.f32.mrb[0].mxu0
        %v610 = vadd.f32 %v280, %v609
        %v611 = vpop.f32.mrb[0].mxu0
        %612 = vmatprep.mubr.bf16.mxu0 0
        %613 = vmatmul.mubr.bf16.gmra.mrb[0].mxu0 %v519
        %v614 = vpop.f32.mrb[0].mxu0
        %v615 = vadd.f32 %v285, %v614
        %v616 = vpop.f32.mrb[0].mxu0
        %v617 = vpop.f32.mrb[0].mxu0
        %v618 = vadd.f32 %v290, %v617
        %v619 = vpop.f32.mrb[0].mxu0
        %620 = vmatprep.mubr.bf16.mxu0 0
        %621 = vmatmul.mubr.bf16.gmra.mrb[0].mxu0 %v522
        %v622 = vpop.f32.mrb[0].mxu0
        %v623 = vadd.f32 %v295, %v622
        %v624 = vpop.f32.mrb[0].mxu0
        %v625 = vpop.f32.mrb[0].mxu0
        %v626 = vadd.f32 %v300, %v625
        %v627 = vpop.f32.mrb[0].mxu0
        %628 = vmatprep.mubr.bf16.mxu0 0
        %629 = vmatmul.mubr.bf16.gmra.mrb[0].mxu0 %v525
        %v630 = vpop.f32.mrb[0].mxu0
        %v631 = vadd.f32 %v305, %v630
        %v632 = vpop.f32.mrb[0].mxu0
        %v633 = vpop.f32.mrb[0].mxu0
        %v634 = vadd.f32 %v310, %v633
        %v635 = vpop.f32.mrb[0].mxu0
        %636 = vmatprep.mubr.bf16.mxu0 0
        %637 = vmatmul.mubr.bf16.gmra.mrb[0].mxu0 %v528
        %v638 = vpop.f32.mrb[0].mxu0
        %v639 = vadd.f32 %v315, %v638
        %v640 = vpop.f32.mrb[0].mxu0
        %v641 = vpop.f32.mrb[0].mxu0
        %v642 = vadd.f32 %v320, %v641
        %v643 = vpop.f32.mrb[0].mxu0
        %644 = vmatprep.mubr.bf16.mxu0 0
        %645 = vmatmul.mubr.bf16.gmra.mrb[0].mxu0 %v531
        %v646 = vpop.f32.mrb[0].mxu0
        %v647 = vadd.f32 %v325, %v646
        %v648 = vpop.f32.mrb[0].mxu0
        %v649 = vpop.f32.mrb[0].mxu0
        %v650 = vadd.f32 %v330, %v649
        %v651 = vpop.f32.mrb[0].mxu0
        %652 = vmatprep.mubr.bf16.mxu0 0
        %653 = vmatmul.mubr.bf16.gmra.mrb[0].mxu0 %v534
        %v654 = vpop.f32.mrb[0].mxu0
        %v655 = vadd.f32 %v335, %v654
        %v656 = vpop.f32.mrb[0].mxu0
        %v657 = vpop.f32.mrb[0].mxu0
        %v658 = vadd.f32 %v340, %v657
        %v659 = vpop.f32.mrb[0].mxu0
        %660 = vmatprep.mubr.bf16.mxu0 0
        %661 = vmatmul.mubr.bf16.gmra.mrb[0].mxu0 %v537
        %v662 = vpop.f32.mrb[0].mxu0
        %v663 = vadd.f32 %v345, %v662
        %v664 = vpop.f32.mrb[0].mxu0
        %v665 = vpop.f32.mrb[0].mxu0
        %v666 = vadd.f32 %v350, %v665
        %v667 = vpop.f32.mrb[0].mxu0
        %668 = vmatprep.mubr.bf16.mxu0 0
        %669 = vmatmul.mubr.bf16.gmra.mrb[0].mxu0 %v540
        %v670 = vpop.f32.mrb[0].mxu0
        %v671 = vadd.f32 %v355, %v670
        %v672 = vpop.f32.mrb[0].mxu0
        %v673 = vpop.f32.mrb[0].mxu0
        %v674 = vadd.f32 %v360, %v673
        %v675 = vpop.f32.mrb[0].mxu0
        %676 = vmatprep.mubr.bf16.mxu0 0
        %677 = vmatmul.mubr.bf16.gmra.mrb[0].mxu0 %v543
        %v678 = vpop.f32.mrb[0].mxu0
        %v679 = vadd.f32 %v365, %v678
        %v680 = vpop.f32.mrb[0].mxu0
        %v681 = vpop.f32.mrb[0].mxu0
        %v682 = vadd.f32 %v370, %v681
        %v683 = vpop.f32.mrb[0].mxu0
        %684 = vmatprep.mubr.bf16.mxu0 0
        %685 = vmatmul.mubr.bf16.gmra.mrb[0].mxu0 %v546
        %v686 = vpop.f32.mrb[0].mxu0
        %v687 = vadd.f32 %v375, %v686
        %v688 = vpop.f32.mrb[0].mxu0
        %v689 = vpop.f32.mrb[0].mxu0
        %v690 = vadd.f32 %v380, %v689
        %v691 = vpop.f32.mrb[0].mxu0
        %692 = vmatprep.mubr.bf16.mxu0 0
        %693 = vmatmul.mubr.bf16.gmra.mrb[0].mxu0 %v549
        %v694 = vpop.f32.mrb[0].mxu0
        %v695 = vadd.f32 %v385, %v694
        %v696 = vpop.f32.mrb[0].mxu0
        %v697 = vpop.f32.mrb[0].mxu0
        %v698 = vadd.f32 %v390, %v697
        %v699 = vpop.f32.mrb[0].mxu0
        %700 = vmatprep.mubr.bf16.mxu0 0
        %701 = vmatmul.mubr.bf16.gmra.mrb[0].mxu0 %v552
        %v702 = vpop.f32.mrb[0].mxu0
        %v703 = vadd.f32 %v395, %v702
        %v704 = vpop.f32.mrb[0].mxu0
        %v705 = vpop.f32.mrb[0].mxu0
        %v706 = vadd.f32 %v400, %v705
        %v707 = vpop.f32.mrb[0].mxu0
        %708 = vmatprep.mubr.bf16.mxu0 0
        %709 = vmatmul.mubr.bf16.gmra.mrb[0].mxu0 %v555
        %v710 = vpop.f32.mrb[0].mxu0
        %v711 = vadd.f32 %v405, %v710
        %v712 = vpop.f32.mrb[0].mxu0
        %v713 = vpop.f32.mrb[0].mxu0
        %v714 = vadd.f32 %v410, %v713
        %v715 = vpop.f32.mrb[0].mxu0
        %716 = vmatprep.mubr.bf16.mxu0 0
        %717 = vmatmul.mubr.bf16.gmra.mrb[0].mxu0 %v558
        %v718 = vpop.f32.mrb[0].mxu0
        %v719 = vadd.f32 %v415, %v718
        %v720 = vpop.f32.mrb[0].mxu0
        %v721 = vpop.f32.mrb[0].mxu0
        %v722 = vadd.f32 %v420, %v721
        %v723 = vpop.f32.mrb[0].mxu0
        %724 = vdwg.mxu0
        %v725 = vmax.f32 %v599, 0.0
        %v726 = vmax.f32 %v602, 0.0
        %v727 = vmax.f32 %v607, 0.0
        %v728 = vmax.f32 %v610, 0.0
        %v729 = vmax.f32 %v615, 0.0
        %v730 = vmax.f32 %v618, 0.0
        %v731 = vmax.f32 %v623, 0.0
        %v732 = vmax.f32 %v626, 0.0
        %v733 = vmax.f32 %v631, 0.0
        %v734 = vmax.f32 %v634, 0.0
        %v735 = vmax.f32 %v639, 0.0
        %v736 = vmax.f32 %v642, 0.0
        %v737 = vmax.f32 %v647, 0.0
        %v738 = vmax.f32 %v650, 0.0
        %v739 = vmax.f32 %v655, 0.0
        %v740 = vmax.f32 %v658, 0.0
        %v741 = vmax.f32 %v663, 0.0
        %v742 = vmax.f32 %v666, 0.0
        %v743 = vmax.f32 %v671, 0.0
        %v744 = vmax.f32 %v674, 0.0
        %v745 = vmax.f32 %v679, 0.0
        %v746 = vmax.f32 %v682, 0.0
        %v747 = vmax.f32 %v687, 0.0
        %v748 = vmax.f32 %v690, 0.0
        %v749 = vmax.f32 %v695, 0.0
        %v750 = vmax.f32 %v698, 0.0
        %v751 = vmax.f32 %v703, 0.0
        %v752 = vmax.f32 %v706, 0.0
        %v753 = vmax.f32 %v711, 0.0
        %v754 = vmax.f32 %v714, 0.0
        %v755 = vmax.f32 %v719, 0.0
        %v756 = vmax.f32 %v722, 0.0
        %v757 = vpack.c.bf16 %v726, %v725
        %v758 = vpack.c.bf16 %v728, %v727
        %v759 = vpack.c.bf16 %v730, %v729
        %v760 = vpack.c.bf16 %v732, %v731
        %v761 = vpack.c.bf16 %v734, %v733
        %v762 = vpack.c.bf16 %v736, %v735
        %v763 = vpack.c.bf16 %v738, %v737
        %v764 = vpack.c.bf16 %v740, %v739
        %v765 = vpack.c.bf16 %v742, %v741
        %v766 = vpack.c.bf16 %v744, %v743
        %v767 = vpack.c.bf16 %v746, %v745
        %v768 = vpack.c.bf16 %v748, %v747
        %v769 = vpack.c.bf16 %v750, %v749
        %v770 = vpack.c.bf16 %v752, %v751
        %v771 = vpack.c.bf16 %v754, %v753
        %v772 = vpack.c.bf16 %v756, %v755
        %v789 = vunpack.c.l.b16 %v757
        %v790 = vunpack.c.h.b16 %v757
        %v791 = vunpack.c.l.b16 %v758
        %v792 = vunpack.c.h.b16 %v758
        %v793 = vunpack.c.l.b16 %v759
        %v794 = vunpack.c.h.b16 %v759
        %v795 = vunpack.c.l.b16 %v760
        %v796 = vunpack.c.h.b16 %v760
        %v797 = vunpack.c.l.b16 %v761
        %v798 = vunpack.c.h.b16 %v761
        %v799 = vunpack.c.l.b16 %v762
        %v800 = vunpack.c.h.b16 %v762
        %v801 = vunpack.c.l.b16 %v763
        %v802 = vunpack.c.h.b16 %v763
        %v803 = vunpack.c.l.b16 %v764
        %v804 = vunpack.c.h.b16 %v764
        %v805 = vunpack.c.l.b16 %v765
        %v806 = vunpack.c.h.b16 %v765
        %v807 = vunpack.c.l.b16 %v766
        %v808 = vunpack.c.h.b16 %v766
        %v809 = vunpack.c.l.b16 %v767
        %v810 = vunpack.c.h.b16 %v767
        %v811 = vunpack.c.l.b16 %v768
        %v812 = vunpack.c.h.b16 %v768
        %v813 = vunpack.c.l.b16 %v769
        %v814 = vunpack.c.h.b16 %v769
        %v815 = vunpack.c.l.b16 %v770
        %v816 = vunpack.c.h.b16 %v770
        %v817 = vunpack.c.l.b16 %v771
        %v818 = vunpack.c.h.b16 %v771
        %v819 = vunpack.c.l.b16 %v772
        %v820 = vunpack.c.h.b16 %v772
        %v821 = vpack.c.b16 %v789, %v789
        %v822 = vpack.c.b16 %v790, %v790
        %v823 = vpack.c.b16 %v791, %v791
        %v824 = vpack.c.b16 %v792, %v792
        %v825 = vpack.c.b16 %v793, %v793
        %v826 = vpack.c.b16 %v794, %v794
        %v827 = vpack.c.b16 %v795, %v795
        %v828 = vpack.c.b16 %v796, %v796
        %v829 = vpack.c.b16 %v797, %v797
        %v830 = vpack.c.b16 %v798, %v798
        %v831 = vpack.c.b16 %v799, %v799
        %v832 = vpack.c.b16 %v800, %v800
        %v833 = vpack.c.b16 %v801, %v801
        %v834 = vpack.c.b16 %v802, %v802
        %v835 = vpack.c.b16 %v803, %v803
        %v836 = vpack.c.b16 %v804, %v804
        %v837 = vpack.c.b16 %v805, %v805
        %v838 = vpack.c.b16 %v806, %v806
        %v839 = vpack.c.b16 %v807, %v807
        %v840 = vpack.c.b16 %v808, %v808
        %v841 = vpack.c.b16 %v809, %v809
        %v842 = vpack.c.b16 %v810, %v810
        %v843 = vpack.c.b16 %v811, %v811
        %v844 = vpack.c.b16 %v812, %v812
        %v845 = vpack.c.b16 %v813, %v813
        %v846 = vpack.c.b16 %v814, %v814
        %v847 = vpack.c.b16 %v815, %v815
        %v848 = vpack.c.b16 %v816, %v816
        %v849 = vpack.c.b16 %v817, %v817
        %v850 = vpack.c.b16 %v818, %v818
        %v851 = vpack.c.b16 %v819, %v819
        %v852 = vpack.c.b16 %v820, %v820
        %885 = vst [vmem:[%s185] sm:$0xf] %v821
        %886 = vst [vmem:[%s185 + $0x4] sm:$0xf] %v822
        %887 = vst [vmem:[%s185 + $0x8] sm:$0xf] %v823
        %888 = vst [vmem:[%s185 + $0xc] sm:$0xf] %v824
        %889 = vst [vmem:[%s185 + $0x10] sm:$0xf] %v825
        %890 = vst [vmem:[%s185 + $0x14] sm:$0xf] %v826
        %891 = vst [vmem:[%s185 + $0x18] sm:$0xf] %v827
        %892 = vst [vmem:[%s185 + $0x1c] sm:$0xf] %v828
        %893 = vst [vmem:[%s185 + $0x20] sm:$0xf] %v829
        %894 = vst [vmem:[%s185 + $0x24] sm:$0xf] %v830
        %895 = vst [vmem:[%s185 + $0x28] sm:$0xf] %v831
        %896 = vst [vmem:[%s185 + $0x2c] sm:$0xf] %v832
        %897 = vst [vmem:[%s185 + $0x30] sm:$0xf] %v833
        %898 = vst [vmem:[%s185 + $0x34] sm:$0xf] %v834
        %899 = vst [vmem:[%s185 + $0x38] sm:$0xf] %v835
        %900 = vst [vmem:[%s185 + $0x3c] sm:$0xf] %v836
        %901 = vst [vmem:[%s185 + $0x40] sm:$0xf] %v837
        %902 = vst [vmem:[%s185 + $0x44] sm:$0xf] %v838
        %903 = vst [vmem:[%s185 + $0x48] sm:$0xf] %v839
        %904 = vst [vmem:[%s185 + $0x4c] sm:$0xf] %v840
        %905 = vst [vmem:[%s185 + $0x50] sm:$0xf] %v841
        %906 = vst [vmem:[%s185 + $0x54] sm:$0xf] %v842
        %907 = vst [vmem:[%s185 + $0x58] sm:$0xf] %v843
        %908 = vst [vmem:[%s185 + $0x5c] sm:$0xf] %v844
        %909 = vst [vmem:[%s185 + $0x60] sm:$0xf] %v845
        %910 = vst [vmem:[%s185 + $0x64] sm:$0xf] %v846
        %911 = vst [vmem:[%s185 + $0x68] sm:$0xf] %v847
        %912 = vst [vmem:[%s185 + $0x6c] sm:$0xf] %v848
        %913 = vst [vmem:[%s185 + $0x70] sm:$0xf] %v849
        %914 = vst [vmem:[%s185 + $0x74] sm:$0xf] %v850
        %915 = vst [vmem:[%s185 + $0x78] sm:$0xf] %v851
        %916 = vst [vmem:[%s185 + $0x7c] sm:$0xf] %v852
        %s917 = sand.u32 %s109, 1
        %s918 = scalar_lea.sflag [#allocation3], %s917
        %s919 = sand.u32 %s109, 1
        %s920 = smul.addr %s919, 128
        %s921 = scalar_lea.vmem [#allocation2], %s920
        // Predicated region
        $region33: #{tpu_custom_call.1} parent=31 // pred_check
          %p922 = pneg %p119
        $region34: #{tpu_custom_call.1} parent=31 // pred_check_branch
          %924 = sbr.rel (%p922) target = $region36
        $region35: #{tpu_custom_call.1} parent=31 // pred_region
          %s926 = ssub.s32 2048, 2048
          %927 = vsyncadd %s918, %s926
          %s928 = smul.addr %s21, 32
          %s929 = sadd.s32 %s22, %s928
          %s930 = smul.addr %s929, 64
          %s931 = scalar_lea.hbm %s3, %s930
          %s932 = sshll.u32 %s921, 4
          %s933 = int_to_ptr.vmem [resolvable:$true] %s932
          %938 = dma.vmem_to_hbm [thread:$0]  %s933, 2048, %s931, %s918, 64, 64, 4
        $region36: #{tpu_custom_call.1} parent=31 // pred_fallthru
          _
      $region32: #{tpu_custom_call.1} parent=5 // pred_fallthru
        _
      %p939 = scmp.le.s32.totalorder 2, %s12
      // Predicated region
      $region37: #{tpu_custom_call.1} parent=5 // pred_check
        %p940 = pneg %p939
      $region38: #{tpu_custom_call.1} parent=5 // pred_check_branch
        %942 = sbr.rel (%p940) target = $region40
      $region39: #{tpu_custom_call.1} parent=5 // pred_region
        %s943 = ssub.s32 %s12, 2
        // Predicated region
        $region41: #{tpu_custom_call.1} parent=39 // pred_check
          %p944 = pneg %p125
        $region42: #{tpu_custom_call.1} parent=39 // pred_check_branch
          %946 = sbr.rel (%p944) target = $region44
        $region43: #{tpu_custom_call.1} parent=39 // pred_region
          %s947 = sand.u32 %s110, 1
          %s948 = scalar_lea.sflag [#allocation3], %s947
          %s949 = sand.u32 %s110, 1
          %s950 = smul.addr %s949, 128
          %s951 = scalar_lea.vmem [#allocation2], %s950
          %952 = dma.done %s948, 2048
        $region44: #{tpu_custom_call.1} parent=39 // pred_fallthru
          _
      $region40: #{tpu_custom_call.1} parent=5 // pred_fallthru
        _
    $region6: #{tpu_custom_call.1} parent=1 // loop_footer
      %s16 = sadd.s32 1, %s12
    $region7: #{tpu_custom_call.1} parent=1 // loop_footer_branch
      %11 = sbr.rel target = $region3
    $region8: #{tpu_custom_call.1} parent=1 // loop_exit
      _
    %953 = vsyncpa [#allocation3], 1
    %s954 = scalar_lea.sflag [#allocation3], 1
    %955 = vsyncpa %s954, 1

</llo_original>
